<compile_context>
chip_gen: v6e
topology: v6e:2x2x1
jax: 0.10.0
libtpu: 0.0.40
codegen_flags: <defaults>
</compile_context>

<pallas_src>
import functools

import jax
import jax.numpy as jnp
from jax import lax
from jax.experimental import pallas as pl
from jax.experimental.pallas import tpu as pltpu


def _fea_loss_kernel(bound_ref, x_ref, out_ref, *, beta, align_type,
                     n_packed, tile_p, k, c):
    """One packed-row tile of the free-energy alignment loss.

    bound_ref : SMEM (1,) float32              -- scalar free-energy bound
    x_ref     : VMEM (tile_p, k*c) logits      -- lane-packed row tile (native dtype)
    out_ref   : VMEM (1, 1, 128) float32       -- this tile's partial sum (lane-dense)
    """
    i = pl.program_id(0)
    inv_beta = 1.0 / beta
    bound = bound_ref[0]

    # Validity mask for padded packed-rows of a partial last tile (select semantics:
    # NaN/Inf coming from undefined padded VMEM rows are discarded, never multiplied).
    packed_row = i * tile_p + lax.broadcasted_iota(jnp.int32, (tile_p, 1), 0)
    valid = packed_row < n_packed                                 # (tile_p, 1) bool

    partial = jnp.zeros((), jnp.float32)
    for j in range(k):                       # static unroll over the k lane groups
        seg = x_ref[:, j * c:(j + 1) * c]    # (tile_p, c) native dtype, static slice
        # min is an exact selection even in bf16; it is the argmax of -beta*x (beta>0)
        row_min = jnp.min(seg, axis=1, keepdims=True)
        row_min_f = row_min.astype(jnp.float32)
        # logsumexp(-beta*x) stabilized at x == row_min:
        #   lse = -beta*row_min + log(sum(exp(-beta*(x - row_min))))
        #   free_energy = -lse/beta = row_min - log(sum)/beta
        s = jnp.sum(jnp.exp(-beta * (seg.astype(jnp.float32) - row_min_f)),
                    axis=1, keepdims=True)                        # (tile_p, 1), >= 1
        free_energy = row_min_f - inv_beta * jnp.log(s)           # (tile_p, 1) f32

        diff = free_energy - bound
        if align_type == "l1":
            term = jnp.abs(diff)
        elif align_type == "mse":
            term = diff * diff
        elif align_type == "max":
            term = jnp.maximum(diff, 0.0)
        else:
            raise ValueError(f"unknown align_type: {align_type}")

        partial = partial + jnp.sum(jnp.where(valid, term, 0.0))

    # Lane-dense unmasked store of this tile's partial sum.
    out_ref[...] = jnp.broadcast_to(partial, out_ref.shape)


def free_energy_alignment_loss(inputs, bound, *, energy_beta, energy_align_type,
                               tile_packed_rows=None):
    """JAX wrapper mirroring FreeEnergyAlignmentLoss(beta, type)(inputs, bound)."""
    assert energy_beta > 0, "beta for energy calculate must be larger than 0"
    assert energy_align_type in ("l1", "mse", "max")

    inputs = jnp.asarray(inputs)
    if not jnp.issubdtype(inputs.dtype, jnp.floating):
        inputs = inputs.astype(jnp.float32)
    n, c = inputs.shape
    itemsize = jnp.dtype(inputs.dtype).itemsize

    # ---- lane packing: fold k consecutive rows into one ~128-lane packed row ----
    # Pure row-major metadata reshape (no transpose, no extra HBM pass). Only pack
    # when k divides N exactly so no row padding is ever needed.
    k = 1
    if c < 128:
        for cand in range(max(1, min(n, 128 // c)), 0, -1):
            if n % cand == 0:
                k = cand
                break
    n_packed = n // k
    width = k * c
    x_packed = inputs.reshape(n_packed, width)

    bound_arr = jnp.asarray(bound, jnp.float32).reshape((1,))

    # ---- tile sizing: bytes-targeted, temporary-aware, generation-aware ----------
    try:
        vmem_cap = int(pltpu.get_tpu_info().vmem_capacity_bytes)
    except Exception:
        vmem_cap = 64 << 20                                  # conservative (v7x per-TC)
    scoped_budget = min(int(vmem_cap * 0.55), 64 << 20)
    # double-buffered native-dtype input + ~3 per-segment f32 temporaries (each ~1/k tile)
    temp_mult = 2.0 + 3.0 * (4.0 / itemsize) / k
    tile_bytes_target = max(1 << 20, int(scoped_budget / temp_mult))

    sub_align = max(8, 32 // itemsize)                       # f32: 8, bf16: 16, int8: 32
    row_bytes = width * itemsize
    if tile_packed_rows is None:
        tile_p = max(sub_align, tile_bytes_target // row_bytes)
    else:
        tile_p = max(1, int(tile_packed_rows))
    if tile_p >= n_packed:
        tile_p = n_packed                                    # full dim == always legal
    else:
        tile_p = max(sub_align, (tile_p // sub_align) * sub_align)

    num_tiles = pl.cdiv(n_packed, tile_p)
    # v7x has 2 TensorCores; avoid a singleton grid when there is enough work so both
    # cores stream rows (no-op on v5e/v6e).
    if tile_packed_rows is None and num_tiles == 1 and n_packed >= 2 * sub_align:
        tile_p = ((pl.cdiv(n_packed, 2) + sub_align - 1) // sub_align) * sub_align
        num_tiles = pl.cdiv(n_packed, tile_p)

    tile_bytes = tile_p * row_bytes
    vmem_limit = int(temp_mult * tile_bytes) + (8 << 20)
    vmem_limit = int(min(max(vmem_limit, 32 << 20), int(vmem_cap * 0.9)))

    kernel = functools.partial(
        _fea_loss_kernel,
        beta=float(energy_beta),
        align_type=energy_align_type,
        n_packed=n_packed,
        tile_p=tile_p,
        k=k,
        c=c,
    )

    partials = pl.pallas_call(
        kernel,
        grid=(num_tiles,),
        out_shape=jax.ShapeDtypeStruct((num_tiles, 1, 128), jnp.float32),
        in_specs=[
            pl.BlockSpec(memory_space=pltpu.MemorySpace.SMEM),   # scalar bound
            pl.BlockSpec((tile_p, width), lambda i: (i, 0)),     # streamed packed rows
        ],
        out_specs=pl.BlockSpec((1, 1, 128), lambda i: (i, 0, 0)),
        compiler_params=pltpu.CompilerParams(
            dimension_semantics=("parallel",),                   # megacore-shardable
            vmem_limit_bytes=vmem_limit,
        ),
    )(bound_arr, x_packed)

    # Per-tile partial sums -> mean over the true N rows.
    return jnp.sum(partials[:, 0, 0]) * (1.0 / n)


def _reference_loss(inputs, bound, *, energy_beta, energy_align_type):
    """Pure-JAX reference matching the PyTorch module exactly (f32 math)."""
    x = jnp.asarray(inputs).astype(jnp.float32)
    m = -1.0 * energy_beta * x
    mmax = jnp.max(m, axis=1, keepdims=True)
    lse = jnp.log(jnp.sum(jnp.exp(m - mmax), axis=1, keepdims=True)) + mmax
    fe = (-1.0 / energy_beta) * lse[:, 0]
    b = jnp.ones_like(fe) * jnp.float32(bound)
    if energy_align_type == "l1":
        return jnp.mean(jnp.abs(fe - b))
    elif energy_align_type == "mse":
        return jnp.mean((fe - b) ** 2)
    else:  # 'max'
        return jnp.mean(jnp.maximum(fe - b, 0.0))


if __name__ == "__main__":
    key = jax.random.PRNGKey(0)
    k1, k2, k3 = jax.random.split(key, 3)

    beta = 0.5
    bound = jnp.float32(-2.5)
    ok = True

    def _check(tag, x, align_type, **kw):
        global ok
        loss = free_energy_alignment_loss(
            x, bound, energy_beta=beta, energy_align_type=align_type, **kw)
        loss = jax.block_until_ready(loss)
        ref = _reference_loss(x, bound, energy_beta=beta, energy_align_type=align_type)
        if not jnp.allclose(loss, ref, rtol=1e-4, atol=1e-5):
            ok = False
            print(f"MISMATCH {tag} ({align_type}): kernel={loss}, ref={ref}")

    # Case 1: small canonical shape, f32, lane-packed (k=4), single tile.
    x_f32 = jax.random.normal(k1, (8, 32), dtype=jnp.float32) * 3.0
    for at in ("l1", "mse", "max"):
        _check("f32 8x32", x_f32, at)

    # Case 2: bf16 streaming, lane-packed (k=4), multi-tile grid with a masked
    # partial last tile (n_packed=50, forced tile of 16 packed rows).
    x_bf16 = (jax.random.normal(k2, (200, 32), dtype=jnp.float32) * 3.0
              ).astype(jnp.bfloat16)
    for at in ("l1", "mse", "max"):
        _check("bf16 200x32", x_bf16, at, tile_packed_rows=16)

    # Case 3: C >= 128 (no packing, k=1), f32, auto-tiled into >= 2 tiles.
    x_wide = jax.random.normal(k3, (64, 160), dtype=jnp.float32) * 2.0
    for at in ("l1", "mse", "max"):
        _check("f32 64x160", x_wide, at)

    if ok:
        print("KERNEL_OK")
</pallas_src>

<mosaic_0001>
module attributes {stable_mosaic.version = 11 : i64} {
  func.func @_fea_loss_kernel(%arg0: i32, %arg1: memref<1xf32, #tpu.memory_space<smem>>, %arg2: memref<2x128xf32, #tpu.memory_space<vmem>>, %arg3: memref<1x1x128xf32, #tpu.memory_space<vmem>>) attributes {dimension_semantics = [#tpu.dimension_semantics<parallel>], iteration_bounds = array<i64: 1>, scalar_prefetch = 0 : i64, scratch_operands = 0 : i64, tpu.core_type = #tpu.core_type<tc>, window_params = [{transform_indices = @transform_0, window_bounds = array<i64: 1>}, {transform_indices = @transform_1, window_bounds = array<i64: 2, 128>}, {transform_indices = @transform_2, window_bounds = array<i64: 1, 1, 128>}]} {
    %c0 = arith.constant 0 : index
    %0 = memref.load %arg1[%c0] : memref<1xf32, #tpu.memory_space<smem>>
    %c2_i32 = arith.constant 2 : i32
    %1 = arith.muli %arg0, %c2_i32 : i32
    %2 = tpu.iota {dimensions = array<i32: 0>} : vector<2x1xi32>
    %3 = vector.broadcast %1 : i32 to vector<2x1xi32>
    %4 = arith.addi %3, %2 : vector<2x1xi32>
    %c2_i32_0 = arith.constant 2 : i32
    %5 = vector.broadcast %c2_i32_0 : i32 to vector<2x1xi32>
    %6 = arith.cmpi slt, %4, %5 : vector<2x1xi32>
    %c0_1 = arith.constant 0 : index
    %c0_2 = arith.constant 0 : index
    %7 = vector.load %arg2[%c0_1, %c0_2] : memref<2x128xf32, #tpu.memory_space<vmem>>, vector<2x32xf32>
    %cst = arith.constant dense<0x7F800000> : vector<2xf32>
    %8 = vector.multi_reduction <minimumf>, %7, %cst [1] : vector<2x32xf32> to vector<2xf32>
    %9 = vector.shape_cast %8 : vector<2xf32> to vector<2x1xf32>
    %10 = vector.broadcast %9 : vector<2x1xf32> to vector<2x32xf32>
    %11 = arith.subf %7, %10 : vector<2x32xf32>
    %cst_3 = arith.constant -5.000000e-01 : f32
    %12 = vector.broadcast %cst_3 : f32 to vector<2x32xf32>
    %13 = arith.mulf %12, %11 : vector<2x32xf32>
    %14 = math.exp %13 : vector<2x32xf32>
    %cst_4 = arith.constant dense<0.000000e+00> : vector<2xf32>
    %15 = vector.multi_reduction <add>, %14, %cst_4 [1] : vector<2x32xf32> to vector<2xf32>
    %16 = vector.shape_cast %15 : vector<2xf32> to vector<2x1xf32>
    %17 = math.log %16 : vector<2x1xf32>
    %cst_5 = arith.constant 2.000000e+00 : f32
    %18 = vector.broadcast %cst_5 : f32 to vector<2x1xf32>
    %19 = arith.mulf %18, %17 : vector<2x1xf32>
    %20 = arith.subf %9, %19 : vector<2x1xf32>
    %21 = vector.broadcast %0 : f32 to vector<2x1xf32>
    %22 = arith.subf %20, %21 : vector<2x1xf32>
    %23 = math.absf %22 : vector<2x1xf32>
    %cst_6 = arith.constant 0.000000e+00 : f32
    %24 = vector.broadcast %cst_6 : f32 to vector<2x1xf32>
    %25 = arith.select %6, %23, %24 : vector<2x1xi1>, vector<2x1xf32>
    %26 = vector.shape_cast %25 : vector<2x1xf32> to vector<1x2x1xf32>
    %cst_7 = arith.constant dense<0.000000e+00> : vector<1xf32>
    %27 = vector.multi_reduction <add>, %26, %cst_7 [1, 2] : vector<1x2x1xf32> to vector<1xf32>
    %28 = vector.shape_cast %27 : vector<1xf32> to vector<1x1x1xf32>
    %29 = vector.extract %28[0, 0, 0] : f32 from vector<1x1x1xf32>
    %cst_8 = arith.constant 0.000000e+00 : f32
    %30 = arith.addf %cst_8, %29 : f32
    %c0_9 = arith.constant 0 : index
    %c32 = arith.constant 32 : index
    %31 = vector.load %arg2[%c0_9, %c32] : memref<2x128xf32, #tpu.memory_space<vmem>>, vector<2x32xf32>
    %cst_10 = arith.constant dense<0x7F800000> : vector<2xf32>
    %32 = vector.multi_reduction <minimumf>, %31, %cst_10 [1] : vector<2x32xf32> to vector<2xf32>
    %33 = vector.shape_cast %32 : vector<2xf32> to vector<2x1xf32>
    %34 = vector.broadcast %33 : vector<2x1xf32> to vector<2x32xf32>
    %35 = arith.subf %31, %34 : vector<2x32xf32>
    %cst_11 = arith.constant -5.000000e-01 : f32
    %36 = vector.broadcast %cst_11 : f32 to vector<2x32xf32>
    %37 = arith.mulf %36, %35 : vector<2x32xf32>
    %38 = math.exp %37 : vector<2x32xf32>
    %cst_12 = arith.constant dense<0.000000e+00> : vector<2xf32>
    %39 = vector.multi_reduction <add>, %38, %cst_12 [1] : vector<2x32xf32> to vector<2xf32>
    %40 = vector.shape_cast %39 : vector<2xf32> to vector<2x1xf32>
    %41 = math.log %40 : vector<2x1xf32>
    %cst_13 = arith.constant 2.000000e+00 : f32
    %42 = vector.broadcast %cst_13 : f32 to vector<2x1xf32>
    %43 = arith.mulf %42, %41 : vector<2x1xf32>
    %44 = arith.subf %33, %43 : vector<2x1xf32>
    %45 = vector.broadcast %0 : f32 to vector<2x1xf32>
    %46 = arith.subf %44, %45 : vector<2x1xf32>
    %47 = math.absf %46 : vector<2x1xf32>
    %cst_14 = arith.constant 0.000000e+00 : f32
    %48 = vector.broadcast %cst_14 : f32 to vector<2x1xf32>
    %49 = arith.select %6, %47, %48 : vector<2x1xi1>, vector<2x1xf32>
    %50 = vector.shape_cast %49 : vector<2x1xf32> to vector<1x2x1xf32>
    %cst_15 = arith.constant dense<0.000000e+00> : vector<1xf32>
    %51 = vector.multi_reduction <add>, %50, %cst_15 [1, 2] : vector<1x2x1xf32> to vector<1xf32>
    %52 = vector.shape_cast %51 : vector<1xf32> to vector<1x1x1xf32>
    %53 = vector.extract %52[0, 0, 0] : f32 from vector<1x1x1xf32>
    %54 = arith.addf %30, %53 : f32
    %c0_16 = arith.constant 0 : index
    %c64 = arith.constant 64 : index
    %55 = vector.load %arg2[%c0_16, %c64] : memref<2x128xf32, #tpu.memory_space<vmem>>, vector<2x32xf32>
    %cst_17 = arith.constant dense<0x7F800000> : vector<2xf32>
    %56 = vector.multi_reduction <minimumf>, %55, %cst_17 [1] : vector<2x32xf32> to vector<2xf32>
    %57 = vector.shape_cast %56 : vector<2xf32> to vector<2x1xf32>
    %58 = vector.broadcast %57 : vector<2x1xf32> to vector<2x32xf32>
    %59 = arith.subf %55, %58 : vector<2x32xf32>
    %cst_18 = arith.constant -5.000000e-01 : f32
    %60 = vector.broadcast %cst_18 : f32 to vector<2x32xf32>
    %61 = arith.mulf %60, %59 : vector<2x32xf32>
    %62 = math.exp %61 : vector<2x32xf32>
    %cst_19 = arith.constant dense<0.000000e+00> : vector<2xf32>
    %63 = vector.multi_reduction <add>, %62, %cst_19 [1] : vector<2x32xf32> to vector<2xf32>
    %64 = vector.shape_cast %63 : vector<2xf32> to vector<2x1xf32>
    %65 = math.log %64 : vector<2x1xf32>
    %cst_20 = arith.constant 2.000000e+00 : f32
    %66 = vector.broadcast %cst_20 : f32 to vector<2x1xf32>
    %67 = arith.mulf %66, %65 : vector<2x1xf32>
    %68 = arith.subf %57, %67 : vector<2x1xf32>
    %69 = vector.broadcast %0 : f32 to vector<2x1xf32>
    %70 = arith.subf %68, %69 : vector<2x1xf32>
    %71 = math.absf %70 : vector<2x1xf32>
    %cst_21 = arith.constant 0.000000e+00 : f32
    %72 = vector.broadcast %cst_21 : f32 to vector<2x1xf32>
    %73 = arith.select %6, %71, %72 : vector<2x1xi1>, vector<2x1xf32>
    %74 = vector.shape_cast %73 : vector<2x1xf32> to vector<1x2x1xf32>
    %cst_22 = arith.constant dense<0.000000e+00> : vector<1xf32>
    %75 = vector.multi_reduction <add>, %74, %cst_22 [1, 2] : vector<1x2x1xf32> to vector<1xf32>
    %76 = vector.shape_cast %75 : vector<1xf32> to vector<1x1x1xf32>
    %77 = vector.extract %76[0, 0, 0] : f32 from vector<1x1x1xf32>
    %78 = arith.addf %54, %77 : f32
    %c0_23 = arith.constant 0 : index
    %c96 = arith.constant 96 : index
    %79 = vector.load %arg2[%c0_23, %c96] : memref<2x128xf32, #tpu.memory_space<vmem>>, vector<2x32xf32>
    %cst_24 = arith.constant dense<0x7F800000> : vector<2xf32>
    %80 = vector.multi_reduction <minimumf>, %79, %cst_24 [1] : vector<2x32xf32> to vector<2xf32>
    %81 = vector.shape_cast %80 : vector<2xf32> to vector<2x1xf32>
    %82 = vector.broadcast %81 : vector<2x1xf32> to vector<2x32xf32>
    %83 = arith.subf %79, %82 : vector<2x32xf32>
    %cst_25 = arith.constant -5.000000e-01 : f32
    %84 = vector.broadcast %cst_25 : f32 to vector<2x32xf32>
    %85 = arith.mulf %84, %83 : vector<2x32xf32>
    %86 = math.exp %85 : vector<2x32xf32>
    %cst_26 = arith.constant dense<0.000000e+00> : vector<2xf32>
    %87 = vector.multi_reduction <add>, %86, %cst_26 [1] : vector<2x32xf32> to vector<2xf32>
    %88 = vector.shape_cast %87 : vector<2xf32> to vector<2x1xf32>
    %89 = math.log %88 : vector<2x1xf32>
    %cst_27 = arith.constant 2.000000e+00 : f32
    %90 = vector.broadcast %cst_27 : f32 to vector<2x1xf32>
    %91 = arith.mulf %90, %89 : vector<2x1xf32>
    %92 = arith.subf %81, %91 : vector<2x1xf32>
    %93 = vector.broadcast %0 : f32 to vector<2x1xf32>
    %94 = arith.subf %92, %93 : vector<2x1xf32>
    %95 = math.absf %94 : vector<2x1xf32>
    %cst_28 = arith.constant 0.000000e+00 : f32
    %96 = vector.broadcast %cst_28 : f32 to vector<2x1xf32>
    %97 = arith.select %6, %95, %96 : vector<2x1xi1>, vector<2x1xf32>
    %98 = vector.shape_cast %97 : vector<2x1xf32> to vector<1x2x1xf32>
    %cst_29 = arith.constant dense<0.000000e+00> : vector<1xf32>
    %99 = vector.multi_reduction <add>, %98, %cst_29 [1, 2] : vector<1x2x1xf32> to vector<1xf32>
    %100 = vector.shape_cast %99 : vector<1xf32> to vector<1x1x1xf32>
    %101 = vector.extract %100[0, 0, 0] : f32 from vector<1x1x1xf32>
    %102 = arith.addf %78, %101 : f32
    %103 = vector.broadcast %102 : f32 to vector<1x1x128xf32>
    %c0_30 = arith.constant 0 : index
    %c0_31 = arith.constant 0 : index
    %c0_32 = arith.constant 0 : index
    %104 = vector.load %arg3[%c0_30, %c0_31, %c0_32] : memref<1x1x128xf32, #tpu.memory_space<vmem>>, vector<1x1x128xf32>
    tpu.vector_store %arg3[%c0_30, %c0_31, %c0_32], %103 {strides = array<i32>} : memref<1x1x128xf32, #tpu.memory_space<vmem>>, vector<1x1x128xf32>,
    return
  }
  func.func @transform_0(%arg0: i32) -> i32 {
    %c0_i32 = arith.constant 0 : i32
    %c0_i32_0 = arith.constant 0 : i32
    return %c0_i32 : i32
  }
  func.func @transform_1(%arg0: i32) -> (i32, i32) {
    %c0_i32 = arith.constant 0 : i32
    %c0_i32_0 = arith.constant 0 : i32
    return %arg0, %c0_i32 : i32, i32
  }
  func.func @transform_2(%arg0: i32) -> (i32, i32, i32) {
    %c0_i32 = arith.constant 0 : i32
    %c0_i32_0 = arith.constant 0 : i32
    %c0_i32_1 = arith.constant 0 : i32
    return %arg0, %c0_i32, %c0_i32_0 : i32, i32, i32
  }
}

</mosaic_0001>

<llo_original>
// kernel: tpu_custom_call.1
$region0: #{tpu_custom_call.1}
  #allocation0 [shape = 'u32[]', space=smem, size = 0x4, offset = 0x4, fixed_abs, tag = 'smem constant byte address 0x4 - core index']
  #allocation1 [shape = 'u32[144,128]{1,0:T(1,128)}', space=vmem, size = 0x12000, scoped, tag = 'internal scratch']
  #allocation2 [shape = 'f32[1]{0:T(128)S(6)}', space=smem, size = 0x200, scoped, tag = 'scoped memory for tpu_custom_call.1']
  %s0 = inlined_call_operand.<no memory space> [shape: f32[1], index: 0, kind: input, shape index: {}]
  %s1 = inlined_call_operand.vmem [shape: f32[2,128], index: 1, kind: input, shape index: {}]
  %s2 = inlined_call_operand.hbm [shape: f32[1,1,128], index: 2, kind: output, shape index: {}]
  %s3 = sld [smem:[#allocation0]]
  $region18: #{tpu_custom_call.1} parent=0
    _
  %s5 = ssub.s32 1, %s3
  %s6 = scalar_select 0, %s5, %s3
  %7 = sst [smem:[#allocation2]] %s0
  $region1: #{tpu_custom_call.1} parent=0
    #allocation3 [shape = 'u8[512]{0}', space=vmem, size = 0x400, scoped, tag = 'output window, operand 0, single buffered']
    #allocation4 [shape = 's32[1]{0}', space=sflag, size = 0x4, scoped, tag = 'scoped memory for tpu_custom_call.1']
    %8 = vsyncpa [#allocation4], 0
    // Predicated region
    $region2: #{tpu_custom_call.1} parent=1 // pred_check
      _
    $region3: #{tpu_custom_call.1} parent=1 // pred_check_branch
      %10 = sbr.rel (0) target = $region5
    $region4: #{tpu_custom_call.1} parent=1 // pred_region
      _
    $region5: #{tpu_custom_call.1} parent=1 // pred_fallthru
      _
    // Predicated region
    $region6: #{tpu_custom_call.1} parent=1 // pred_check
      _
    $region7: #{tpu_custom_call.1} parent=1 // pred_check_branch
      %12 = sbr.rel (0) target = $region9
    $region8: #{tpu_custom_call.1} parent=1 // pred_region
      _
    $region9: #{tpu_custom_call.1} parent=1 // pred_fallthru
      _
    %s13 = sld [smem:[#allocation2]]
    %s14 = smul.u32 0, 2
    %v15 = vlaneseq
    %v16 = vshrl.u32 %v15, 7
    %v17 = vstv %s14
    %v18 = vadd.s32 %v17, %v16
    %vm19 = vcmp.lt.s32.totalorder %v18, 2
    %v20 = vld [vmem:[%s1] sm:$0x3]
    %vm21 = vcmask 254976
    %v22 = vsel %vm21, %v20, inf
    %23 = vmin.xlane.f32.xlu0 %v22
    %v24 = vpop.xlane.xlu0 %23
    %v25 = vsub.f32 %v20, %v24
    %v26 = vmul.f32 %v25, -0.5
    %v27 = vmul.f32 %v26, 1.442695
    %v28 = vpow.pop %v27
    %v29 = vsel %vm21, %v28, 0.0
    %30 = vadd.xlane.f32.xlu0 %v29
    %v31 = vpop.xlane.xlu0 %30
    %v32 = vlog2.pop %v31
    %v33 = vmul.f32 %v32, 0.6931472
    %v34 = vmul.f32 %v33, 2.0
    %v35 = vsub.f32 %v24, %v34
    %v36 = vstv %s13
    %v37 = vsub.f32 %v35, %v36
    %v38 = vand.u32 2147483647, %v37
    %v39 = vsel %vm19, %v38, 0.0
    %vm40 = vcmask 1024
    %v41 = vsel %vm40, %v39, 0.0
    %42 = vadd.xlane.f32.xlu0 %v41
    %v43 = vpop.xlane.xlu0 %42
    %v44 = vrot.slane %v43, 4
    %v45 = vadd.f32 %v43, %v44
    %v46 = vrot.slane %v45, 2
    %v47 = vadd.f32 %v45, %v46
    %v48 = vrot.slane %v47, 1
    %v49 = vadd.f32 %v47, %v48
    %s50 = vtos %v49
    %s51 = sadd.f32 %s50, 0.0
    %vm52 = vcmask 517376
    %v53 = vsel %vm52, %v20, inf
    %54 = vmin.xlane.f32.xlu0 %v53
    %v55 = vpop.xlane.xlu0 %54
    %v56 = vsub.f32 %v20, %v55
    %v57 = vmul.f32 %v56, -0.5
    %v58 = vmul.f32 %v57, 1.442695
    %v59 = vpow.pop %v58
    %61 = vrot.lane.b32.xlu0 %v59, 96
    %v62 = vpop.permute.xlu0 %61
    %v64 = vsel %vm21, %v62, 0.0
    %65 = vadd.xlane.f32.xlu0 %v64
    %v66 = vpop.xlane.xlu0 %65
    %v67 = vlog2.pop %v66
    %v68 = vmul.f32 %v67, 0.6931472
    %v69 = vmul.f32 %v68, 2.0
    %v70 = vsub.f32 %v55, %v69
    %v71 = vsub.f32 %v70, %v36
    %v72 = vand.u32 2147483647, %v71
    %v73 = vsel %vm19, %v72, 0.0
    %v74 = vsel %vm40, %v73, 0.0
    %75 = vadd.xlane.f32.xlu0 %v74
    %v76 = vpop.xlane.xlu0 %75
    %v77 = vrot.slane %v76, 4
    %v78 = vadd.f32 %v76, %v77
    %v79 = vrot.slane %v78, 2
    %v80 = vadd.f32 %v78, %v79
    %v81 = vrot.slane %v80, 1
    %v82 = vadd.f32 %v80, %v81
    %s83 = vtos %v82
    %s84 = sadd.f32 %s51, %s83
    %vm85 = vcmask 779776
    %v86 = vsel %vm85, %v20, inf
    %87 = vmin.xlane.f32.xlu0 %v86
    %v88 = vpop.xlane.xlu0 %87
    %v89 = vsub.f32 %v20, %v88
    %v90 = vmul.f32 %v89, -0.5
    %v91 = vmul.f32 %v90, 1.442695
    %v92 = vpow.pop %v91
    %94 = vrot.lane.b32.xlu0 %v92, 64
    %v95 = vpop.permute.xlu0 %94
    %v97 = vsel %vm21, %v95, 0.0
    %98 = vadd.xlane.f32.xlu0 %v97
    %v99 = vpop.xlane.xlu0 %98
    %v100 = vlog2.pop %v99
    %v101 = vmul.f32 %v100, 0.6931472
    %v102 = vmul.f32 %v101, 2.0
    %v103 = vsub.f32 %v88, %v102
    %v104 = vsub.f32 %v103, %v36
    %v105 = vand.u32 2147483647, %v104
    %v106 = vsel %vm19, %v105, 0.0
    %v107 = vsel %vm40, %v106, 0.0
    %108 = vadd.xlane.f32.xlu0 %v107
    %v109 = vpop.xlane.xlu0 %108
    %v110 = vrot.slane %v109, 4
    %v111 = vadd.f32 %v109, %v110
    %v112 = vrot.slane %v111, 2
    %v113 = vadd.f32 %v111, %v112
    %v114 = vrot.slane %v113, 1
    %v115 = vadd.f32 %v113, %v114
    %s116 = vtos %v115
    %s117 = sadd.f32 %s84, %s116
    %vm118 = vcmask 1042176
    %v119 = vsel %vm118, %v20, inf
    %120 = vmin.xlane.f32.xlu0 %v119
    %v121 = vpop.xlane.xlu0 %120
    %v122 = vsub.f32 %v20, %v121
    %v123 = vmul.f32 %v122, -0.5
    %v124 = vmul.f32 %v123, 1.442695
    %v125 = vpow.pop %v124
    %127 = vrot.lane.b32.xlu0 %v125, 32
    %v128 = vpop.permute.xlu0 %127
    %v130 = vsel %vm21, %v128, 0.0
    %131 = vadd.xlane.f32.xlu0 %v130
    %v132 = vpop.xlane.xlu0 %131
    %v133 = vlog2.pop %v132
    %v134 = vmul.f32 %v133, 0.6931472
    %v135 = vmul.f32 %v134, 2.0
    %v136 = vsub.f32 %v121, %v135
    %v137 = vsub.f32 %v136, %v36
    %v138 = vand.u32 2147483647, %v137
    %v139 = vsel %vm19, %v138, 0.0
    %v140 = vsel %vm40, %v139, 0.0
    %141 = vadd.xlane.f32.xlu0 %v140
    %v142 = vpop.xlane.xlu0 %141
    %v143 = vrot.slane %v142, 4
    %v144 = vadd.f32 %v142, %v143
    %v145 = vrot.slane %v144, 2
    %v146 = vadd.f32 %v144, %v145
    %v147 = vrot.slane %v146, 1
    %v148 = vadd.f32 %v146, %v147
    %s149 = vtos %v148
    %s150 = sadd.f32 %s117, %s149
    %v151 = vstv %s150
    %152 = vst [vmem:[#allocation3] sm:$0x1] %v151
    // Predicated region
    $region10: #{tpu_custom_call.1} parent=1 // pred_check
      _
    $region11: #{tpu_custom_call.1} parent=1 // pred_check_branch
      %154 = sbr.rel (0) target = $region13
    $region12: #{tpu_custom_call.1} parent=1 // pred_region
      %s156 = ssub.s32 16, 16
      %157 = vsyncadd [#allocation4], %s156
      %s159 = sshll.u32 [#allocation3], 4
      %s160 = int_to_ptr.vmem [resolvable:$true] %s159
      %162 = dma.vmem_to_hbm [thread:$0]  %s160, 16, %s2, [#allocation4]
    $region13: #{tpu_custom_call.1} parent=1 // pred_fallthru
      _
    // Predicated region
    $region14: #{tpu_custom_call.1} parent=1 // pred_check
      _
    $region15: #{tpu_custom_call.1} parent=1 // pred_check_branch
      %164 = sbr.rel (0) target = $region17
    $region16: #{tpu_custom_call.1} parent=1 // pred_region
      %165 = dma.done [#allocation4], 16
    $region17: #{tpu_custom_call.1} parent=1 // pred_fallthru
      _
    %166 = vsyncpa [#allocation4], 1

</llo_original>
